<compile_context>
chip_gen: v7x
topology: tpu7x:2x2x1
jax: 0.10.0
libtpu: 0.0.40
codegen_flags: <defaults>
</compile_context>

<pallas_src>
import jax
import jax.numpy as jnp
from jax import lax
from jax.experimental import pallas as pl
from jax.experimental.pallas import tpu as pltpu

LANE = 128


def _round_up(n, m):
    return ((n + m - 1) // m) * m


def mlp_kernel(x_ref, w1_ref, b1_ref, w2t_ref, b2_ref, o_ref):
    # fc1: (TB, F) @ (F, Hp) on the MXU, f32 accumulation.  x is cast to the
    # MXU operand dtype in-kernel (x stays f32 in HBM).
    h = jnp.dot(x_ref[...].astype(w1_ref.dtype), w1_ref[...],
                preferred_element_type=jnp.float32)
    # Bias + ReLU in f32 (v5e has no bf16 VPU).
    h = jnp.maximum(h + b1_ref[...], 0.0)
    # fc2 as  w2^T @ h^T  via an A @ B^T contraction (same pattern as the
    # q @ k^T dot in flash attention): (O, Hp) x (TB, Hp) contracting Hp
    # -> (O, TB).  Batch lands in the lane dimension => lane-dense store.
    o = lax.dot_general(w2t_ref[...], h.astype(w2t_ref.dtype),
                        dimension_numbers=(((1,), (1,)), ((), ())),
                        preferred_element_type=jnp.float32)
    o_ref[...] = (o + b2_ref[...]).astype(o_ref.dtype)


def mi_red_neuronal(x, w1, b1, w2, b2, *, block_b=4096,
                    compute_dtype=jnp.bfloat16):
    """Forward pass of MiRedNeuronal.

    x: (B, F); w1: (F, H); b1: (H,); w2: (H, O); b2: (O,).
    Weights are stored pre-transposed as (in, out) vs. torch.nn.Linear.
    """
    B, F = x.shape
    H = w1.shape[1]
    O = w2.shape[1]
    Hp = _round_up(H, LANE)

    # ---- One-time weight prep (tiny, outside the kernel) --------------------
    w1p = jnp.pad(w1, ((0, 0), (0, Hp - H))).astype(compute_dtype)      # (F, Hp)
    b1p = jnp.pad(b1.reshape(1, H), ((0, 0), (0, Hp - H))
                  ).astype(jnp.float32)                                 # (1, Hp)
    w2t = jnp.pad(w2.T, ((0, 0), (0, Hp - H))).astype(compute_dtype)    # (O, Hp)
    b2c = b2.reshape(O, 1).astype(jnp.float32)                          # (O, 1)

    # Batch tile: multiple of 128 (lane-dense output), capped at ~B/2 so the
    # grid has >=2 steps (both v7x TensorCores), and at block_b for VMEM.
    half = _round_up(pl.cdiv(B, 2), LANE)
    TB = max(LANE, min(_round_up(block_b, LANE), half))
    grid = (pl.cdiv(B, TB),)

    bytes_accessed = (
        x.size * x.dtype.itemsize
        + w1p.size * w1p.dtype.itemsize + b1p.size * 4
        + w2t.size * w2t.dtype.itemsize + b2c.size * 4
        + B * O * 4)
    cost = pl.CostEstimate(flops=2 * B * (F * Hp + Hp * O),
                           transcendentals=0,
                           bytes_accessed=int(bytes_accessed))

    out_t = pl.pallas_call(
        mlp_kernel,
        out_shape=jax.ShapeDtypeStruct((O, B), jnp.float32),
        grid=grid,
        in_specs=[
            pl.BlockSpec((TB, F), lambda i: (i, 0)),     # batch-tiled input
            pl.BlockSpec((F, Hp), lambda i: (0, 0)),     # weights VMEM-resident
            pl.BlockSpec((1, Hp), lambda i: (0, 0)),
            pl.BlockSpec((O, Hp), lambda i: (0, 0)),
            pl.BlockSpec((O, 1), lambda i: (0, 0)),
        ],
        out_specs=pl.BlockSpec((O, TB), lambda i: (0, i)),  # lane-dense batch
        compiler_params=pltpu.CompilerParams(
            dimension_semantics=("parallel",),           # no cross-step carry
            vmem_limit_bytes=32 * 1024 * 1024,
        ),
        cost_estimate=cost,
    )(x, w1p, b1p, w2t, b2c)

    # (O, B) -> (B, O).  For O == 1 this is a free reshape (same layout).
    return out_t.reshape(B, O) if O == 1 else out_t.T


def reference(x, w1, b1, w2, b2):
    h = jnp.maximum(x @ w1 + b1.reshape(1, -1), 0.0)
    return h @ w2 + b2.reshape(1, -1)


if __name__ == "__main__":
    # Shapes consistent with the module: input_size=16, hidden=64, output=1.
    batch = 512          # grid = 2 batch tiles -> exercises tiling / megacore
    input_size = 16
    hidden_size = 64
    output_size = 1

    key = jax.random.PRNGKey(0)
    kx, kw1, kb1, kw2, kb2 = jax.random.split(key, 5)

    x = jax.random.normal(kx, (batch, input_size), dtype=jnp.float32)

    # PyTorch-Linear-style uniform init, stored transposed as (in, out).
    bound1 = 1.0 / jnp.sqrt(input_size)
    w1 = jax.random.uniform(kw1, (input_size, hidden_size),
                            minval=-bound1, maxval=bound1, dtype=jnp.float32)
    b1 = jax.random.uniform(kb1, (hidden_size,),
                            minval=-bound1, maxval=bound1, dtype=jnp.float32)

    bound2 = 1.0 / jnp.sqrt(hidden_size)
    w2 = jax.random.uniform(kw2, (hidden_size, output_size),
                            minval=-bound2, maxval=bound2, dtype=jnp.float32)
    b2 = jax.random.uniform(kb2, (output_size,),
                            minval=-bound2, maxval=bound2, dtype=jnp.float32)

    ref = reference(x, w1, b1, w2, b2)

    # f32 MXU operands: matches the XLA reference tightly.
    out_f32 = jax.block_until_ready(
        mi_red_neuronal(x, w1, b1, w2, b2, compute_dtype=jnp.float32))
    assert out_f32.shape == (batch, output_size)
    assert jnp.allclose(out_f32, ref, atol=1e-5, rtol=1e-5)

    # Default path: bf16 MXU operands with f32 accumulation (x stays f32).
    out_bf16 = jax.block_until_ready(mi_red_neuronal(x, w1, b1, w2, b2))
    assert out_bf16.shape == (batch, output_size)
    assert jnp.allclose(out_bf16, ref, atol=5e-2, rtol=5e-2)

    # Ragged batch (not a multiple of the 128-lane tile): exercises the masked
    # partial last tile on both the input (sublanes) and output (lanes).
    xr = x[:250]
    ref_r = reference(xr, w1, b1, w2, b2)
    out_r = jax.block_until_ready(
        mi_red_neuronal(xr, w1, b1, w2, b2, compute_dtype=jnp.float32))
    assert out_r.shape == (250, output_size)
    assert jnp.allclose(out_r, ref_r, atol=1e-5, rtol=1e-5)

    print("KERNEL_OK")
</pallas_src>

<mosaic_0001>
module attributes {stable_mosaic.version = 11 : i64} {
  func.func @mlp_kernel(%arg0: i32, %arg1: memref<256x16xf32, #tpu.memory_space<vmem>>, %arg2: memref<16x128xf32, #tpu.memory_space<vmem>>, %arg3: memref<1x128xf32, #tpu.memory_space<vmem>>, %arg4: memref<1x128xf32, #tpu.memory_space<vmem>>, %arg5: memref<1x1xf32, #tpu.memory_space<vmem>>, %arg6: memref<1x256xf32, #tpu.memory_space<vmem>>) attributes {dimension_semantics = [#tpu.dimension_semantics<parallel>], iteration_bounds = array<i64: 2>, scalar_prefetch = 0 : i64, scratch_operands = 0 : i64, tpu.core_type = #tpu.core_type<tc>, window_params = [{transform_indices = @transform_0, window_bounds = array<i64: 256, 16>}, {pipeline_mode = #tpu.pipeline_mode<synchronous>, transform_indices = @transform_1, window_bounds = array<i64: 16, 128>}, {pipeline_mode = #tpu.pipeline_mode<synchronous>, transform_indices = @transform_2, window_bounds = array<i64: 1, 128>}, {pipeline_mode = #tpu.pipeline_mode<synchronous>, transform_indices = @transform_3, window_bounds = array<i64: 1, 128>}, {pipeline_mode = #tpu.pipeline_mode<synchronous>, transform_indices = @transform_4, window_bounds = array<i64: 1, 1>}, {transform_indices = @transform_5, window_bounds = array<i64: 1, 256>}]} {
    %c0 = arith.constant 0 : index
    %c0_0 = arith.constant 0 : index
    %0 = vector.load %arg1[%c0, %c0_0] : memref<256x16xf32, #tpu.memory_space<vmem>>, vector<256x16xf32>
    %c0_1 = arith.constant 0 : index
    %c0_2 = arith.constant 0 : index
    %1 = vector.load %arg2[%c0_1, %c0_2] : memref<16x128xf32, #tpu.memory_space<vmem>>, vector<16x128xf32>
    %cst = arith.constant dense<0.000000e+00> : vector<256x128xf32>
    %2 = tpu.matmul %0, %1, %cst {dimension_numbers = #tpu.dot_dimension_numbers<[1], [0], [0], [1], [0, 0, 1, 1], [], []>} : vector<256x16xf32>, vector<16x128xf32>, vector<256x128xf32> -> vector<256x128xf32>
    %c0_3 = arith.constant 0 : index
    %c0_4 = arith.constant 0 : index
    %3 = vector.load %arg3[%c0_3, %c0_4] : memref<1x128xf32, #tpu.memory_space<vmem>>, vector<1x128xf32>
    %4 = vector.broadcast %3 : vector<1x128xf32> to vector<256x128xf32>
    %5 = arith.addf %2, %4 : vector<256x128xf32>
    %cst_5 = arith.constant 0.000000e+00 : f32
    %6 = vector.broadcast %cst_5 : f32 to vector<256x128xf32>
    %7 = arith.maximumf %5, %6 : vector<256x128xf32>
    %c0_6 = arith.constant 0 : index
    %c0_7 = arith.constant 0 : index
    %8 = vector.load %arg4[%c0_6, %c0_7] : memref<1x128xf32, #tpu.memory_space<vmem>>, vector<1x128xf32>
    %cst_8 = arith.constant dense<0.000000e+00> : vector<1x256xf32>
    %9 = tpu.matmul %8, %7, %cst_8 {dimension_numbers = #tpu.dot_dimension_numbers<[1], [1], [0], [0], [0, 0, 1, 0], [], []>} : vector<1x128xf32>, vector<256x128xf32>, vector<1x256xf32> -> vector<1x256xf32>
    %c0_9 = arith.constant 0 : index
    %c0_10 = arith.constant 0 : index
    %10 = vector.load %arg5[%c0_9, %c0_10] : memref<1x1xf32, #tpu.memory_space<vmem>>, vector<1x1xf32>
    %11 = vector.broadcast %10 : vector<1x1xf32> to vector<1x256xf32>
    %12 = arith.addf %9, %11 : vector<1x256xf32>
    %c0_11 = arith.constant 0 : index
    %c0_12 = arith.constant 0 : index
    %13 = vector.load %arg6[%c0_11, %c0_12] : memref<1x256xf32, #tpu.memory_space<vmem>>, vector<1x256xf32>
    tpu.vector_store %arg6[%c0_11, %c0_12], %12 {strides = array<i32>} : memref<1x256xf32, #tpu.memory_space<vmem>>, vector<1x256xf32>,
    return
  }
  func.func @transform_0(%arg0: i32) -> (i32, i32) {
    %c0_i32 = arith.constant 0 : i32
    %c0_i32_0 = arith.constant 0 : i32
    return %arg0, %c0_i32 : i32, i32
  }
  func.func @transform_1(%arg0: i32) -> (i32, i32) {
    %c0_i32 = arith.constant 0 : i32
    %c0_i32_0 = arith.constant 0 : i32
    %c0_i32_1 = arith.constant 0 : i32
    return %c0_i32, %c0_i32_0 : i32, i32
  }
  func.func @transform_2(%arg0: i32) -> (i32, i32) {
    %c0_i32 = arith.constant 0 : i32
    %c0_i32_0 = arith.constant 0 : i32
    %c0_i32_1 = arith.constant 0 : i32
    return %c0_i32, %c0_i32_0 : i32, i32
  }
  func.func @transform_3(%arg0: i32) -> (i32, i32) {
    %c0_i32 = arith.constant 0 : i32
    %c0_i32_0 = arith.constant 0 : i32
    %c0_i32_1 = arith.constant 0 : i32
    return %c0_i32, %c0_i32_0 : i32, i32
  }
  func.func @transform_4(%arg0: i32) -> (i32, i32) {
    %c0_i32 = arith.constant 0 : i32
    %c0_i32_0 = arith.constant 0 : i32
    %c0_i32_1 = arith.constant 0 : i32
    return %c0_i32, %c0_i32_0 : i32, i32
  }
  func.func @transform_5(%arg0: i32) -> (i32, i32) {
    %c0_i32 = arith.constant 0 : i32
    %c0_i32_0 = arith.constant 0 : i32
    return %c0_i32, %arg0 : i32, i32
  }
}

</mosaic_0001>

<llo_original>
// kernel: tpu_custom_call.1
$region0: #{tpu_custom_call.1}
  #allocation0 [shape = 'u32[]', space=smem, size = 0x4, offset = 0x4, fixed_abs, tag = 'smem constant byte address 0x4 - core index']
  #allocation1 [shape = 'u32[144,128]{1,0:T(1,128)}', space=vmem, size = 0x12000, scoped, tag = 'internal scratch']
  #allocation2 [shape = 'f32[1,1]{1,0:T(1,128)S(1)}', space=vmem, size = 0x200, scoped, tag = 'scoped memory for tpu_custom_call.1']
  %s0 = inlined_call_operand.vmem [shape: f32[512,16], index: 0, kind: input, shape index: {}]
  %s1 = inlined_call_operand.vmem [shape: f32[16,128], index: 1, kind: input, shape index: {}]
  %s2 = inlined_call_operand.vmem [shape: f32[1,128], index: 2, kind: input, shape index: {}]
  %s3 = inlined_call_operand.vmem [shape: f32[1,128], index: 3, kind: input, shape index: {}]
  %s4 = inlined_call_operand.<no memory space> [shape: f32[1,1], index: 4, kind: input, shape index: {}]
  %s5 = inlined_call_operand.hbm [shape: f32[1,512], index: 5, kind: output, shape index: {}]
  %s6 = sld [smem:[#allocation0]]
  $region53: #{tpu_custom_call.1} parent=0
    _
  %s8 = ssub.s32 1, %s6
  %s9 = scalar_select 0, %s8, %s6
  %v10 = vstv %s4
  %11 = vst [vmem:[#allocation2] sm:$0x1] %v10
  $region1: #{tpu_custom_call.1} parent=0
    #allocation3 [shape = 'u8[2048]{0}', space=vmem, size = 0x800, scoped, tag = 'output window, operand 0']
    #allocation4 [shape = 's32[2]{0}', space=sflag, size = 0x8, scoped, tag = 'scoped memory for tpu_custom_call.1']
    %12 = vsyncpa [#allocation4], 0
    %s13 = scalar_lea.sflag [#allocation4], 1
    %14 = vsyncpa %s13, 0
    loop: start=0, step=1, limit=4
    $region2: #{tpu_custom_call.1} parent=1 // loop_pre_header
      _
    $region3: #{tpu_custom_call.1} parent=1 // loop_header
      %s16 = sphi 0, %s20
      %p17 = scmp.ge.s32.totalorder %s16, 4
      %s26 = sphi 0, %s28
      %s29 = sphi 0, %s26
      %s30 = sphi 0, %s29
      %s46 = sphi 0, %s30
      %s50 = sphi 0, %s50
      %s52 = sphi 0, %s50
      %s53 = sphi 0, %s52
      %s67 = sphi 0, %s53
      %s71 = sphi 0, %s71
      %s73 = sphi 0, %s71
      %s74 = sphi 0, %s73
      %s88 = sphi 0, %s74
      %s92 = sphi 0, %s92
      %s94 = sphi 0, %s92
      %s95 = sphi 0, %s94
      %s109 = sphi 0, %s95
      %s113 = sphi 0, %s113
      %s115 = sphi 0, %s113
      %s116 = sphi 0, %s115
      %s130 = sphi 0, %s116
      %s136 = sphi 0, %s138
      %s139 = sphi 0, %s136
      %s140 = sphi 0, %s139
      %s156 = sphi 0, %s140
    $region4: #{tpu_custom_call.1} parent=1 // loop_header_branch
      %19 = sbr.rel (%p17) target = $region8
    $region5: #{tpu_custom_call.1} parent=1 // loop_body
      %s21 = ssub.s32 %s16, 1
      %s22 = ssub.s32 %s16, 2
      %s23 = sadd.s32 %s16, 1
      %s24 = ssub.s32 %s16, %s23
      %p25 = scmp.eq.s32.totalorder %s24, 0
      %s27 = sadd.s32 %s26, 1
      %s28 = scalar_select %p25, %s26, %s27
      %p31 = pneg %p25
      %p32 = scmp.eq.s32.totalorder %s16, 1
      %p33 = por %p31, %p32
      %p34 = scmp.ne.s32.totalorder %s26, %s29
      %p35 = scmp.eq.s32.totalorder %s16, 0
      %p36 = por %p34, %p35
      %p37 = scmp.ne.s32.totalorder %s26, %s29
      %p38 = scmp.eq.s32.totalorder %s21, 1
      %p39 = por %p37, %p38
      %p40 = scmp.ne.s32.totalorder %s29, %s30
      %p41 = scmp.eq.s32.totalorder %s21, 0
      %p42 = por %p40, %p41
      %p43 = scmp.ne.s32.totalorder %s29, %s30
      %p44 = scmp.eq.s32.totalorder %s22, 1
      %p45 = por %p43, %p44
      %p47 = scmp.ne.s32.totalorder %s30, %s46
      %p48 = scmp.eq.s32.totalorder %s22, 0
      %p49 = por %p47, %p48
      %s51 = sadd.s32 %s50, 1
      %p54 = scmp.eq.s32.totalorder %s16, 1
      %p55 = scmp.ne.s32.totalorder %s50, %s52
      %p56 = scmp.eq.s32.totalorder %s16, 0
      %p57 = por %p55, %p56
      %p58 = scmp.ne.s32.totalorder %s50, %s52
      %p59 = scmp.eq.s32.totalorder %s21, 1
      %p60 = por %p58, %p59
      %p61 = scmp.ne.s32.totalorder %s52, %s53
      %p62 = scmp.eq.s32.totalorder %s21, 0
      %p63 = por %p61, %p62
      %p64 = scmp.ne.s32.totalorder %s52, %s53
      %p65 = scmp.eq.s32.totalorder %s22, 1
      %p66 = por %p64, %p65
      %p68 = scmp.ne.s32.totalorder %s53, %s67
      %p69 = scmp.eq.s32.totalorder %s22, 0
      %p70 = por %p68, %p69
      %s72 = sadd.s32 %s71, 1
      %p75 = scmp.eq.s32.totalorder %s16, 1
      %p76 = scmp.ne.s32.totalorder %s71, %s73
      %p77 = scmp.eq.s32.totalorder %s16, 0
      %p78 = por %p76, %p77
      %p79 = scmp.ne.s32.totalorder %s71, %s73
      %p80 = scmp.eq.s32.totalorder %s21, 1
      %p81 = por %p79, %p80
      %p82 = scmp.ne.s32.totalorder %s73, %s74
      %p83 = scmp.eq.s32.totalorder %s21, 0
      %p84 = por %p82, %p83
      %p85 = scmp.ne.s32.totalorder %s73, %s74
      %p86 = scmp.eq.s32.totalorder %s22, 1
      %p87 = por %p85, %p86
      %p89 = scmp.ne.s32.totalorder %s74, %s88
      %p90 = scmp.eq.s32.totalorder %s22, 0
      %p91 = por %p89, %p90
      %s93 = sadd.s32 %s92, 1
      %p96 = scmp.eq.s32.totalorder %s16, 1
      %p97 = scmp.ne.s32.totalorder %s92, %s94
      %p98 = scmp.eq.s32.totalorder %s16, 0
      %p99 = por %p97, %p98
      %p100 = scmp.ne.s32.totalorder %s92, %s94
      %p101 = scmp.eq.s32.totalorder %s21, 1
      %p102 = por %p100, %p101
      %p103 = scmp.ne.s32.totalorder %s94, %s95
      %p104 = scmp.eq.s32.totalorder %s21, 0
      %p105 = por %p103, %p104
      %p106 = scmp.ne.s32.totalorder %s94, %s95
      %p107 = scmp.eq.s32.totalorder %s22, 1
      %p108 = por %p106, %p107
      %p110 = scmp.ne.s32.totalorder %s95, %s109
      %p111 = scmp.eq.s32.totalorder %s22, 0
      %p112 = por %p110, %p111
      %s114 = sadd.s32 %s113, 1
      %p117 = scmp.eq.s32.totalorder %s16, 1
      %p118 = scmp.ne.s32.totalorder %s113, %s115
      %p119 = scmp.eq.s32.totalorder %s16, 0
      %p120 = por %p118, %p119
      %p121 = scmp.ne.s32.totalorder %s113, %s115
      %p122 = scmp.eq.s32.totalorder %s21, 1
      %p123 = por %p121, %p122
      %p124 = scmp.ne.s32.totalorder %s115, %s116
      %p125 = scmp.eq.s32.totalorder %s21, 0
      %p126 = por %p124, %p125
      %p127 = scmp.ne.s32.totalorder %s115, %s116
      %p128 = scmp.eq.s32.totalorder %s22, 1
      %p129 = por %p127, %p128
      %p131 = scmp.ne.s32.totalorder %s116, %s130
      %p132 = scmp.eq.s32.totalorder %s22, 0
      %p133 = por %p131, %p132
      %s134 = ssub.s32 %s16, %s23
      %p135 = scmp.eq.s32.totalorder %s134, 0
      %s137 = sadd.s32 %s136, 1
      %s138 = scalar_select %p135, %s136, %s137
      %p141 = pneg %p135
      %p142 = scmp.eq.s32.totalorder %s16, 1
      %p143 = por %p141, %p142
      %p144 = scmp.ne.s32.totalorder %s136, %s139
      %p145 = scmp.eq.s32.totalorder %s16, 0
      %p146 = por %p144, %p145
      %p147 = scmp.ne.s32.totalorder %s136, %s139
      %p148 = scmp.eq.s32.totalorder %s21, 1
      %p149 = por %p147, %p148
      %p150 = scmp.ne.s32.totalorder %s139, %s140
      %p151 = scmp.eq.s32.totalorder %s21, 0
      %p152 = por %p150, %p151
      %p153 = scmp.ne.s32.totalorder %s139, %s140
      %p154 = scmp.eq.s32.totalorder %s22, 1
      %p155 = por %p153, %p154
      %p157 = scmp.ne.s32.totalorder %s140, %s156
      %p158 = scmp.eq.s32.totalorder %s22, 0
      %p159 = por %p157, %p158
      %p160 = scmp.le.s32.totalorder 1, %s16
      %p161 = scmp.lt.s32.totalorder %s16, 3
      %p162 = pnand %p160, %p161
      %p163 = pneg %p162
      // Predicated region
      $region9: #{tpu_custom_call.1} parent=5 // pred_check
        _
      $region10: #{tpu_custom_call.1} parent=5 // pred_check_branch
        %165 = sbr.rel (%p162) target = $region12
      $region11: #{tpu_custom_call.1} parent=5 // pred_region
        %s166 = ssub.s32 %s16, 1
        // Predicated region
        $region13: #{tpu_custom_call.1} parent=11 // pred_check
          %p167 = pneg %p63
        $region14: #{tpu_custom_call.1} parent=11 // pred_check_branch
          %169 = sbr.rel (%p167) target = $region16
        $region15: #{tpu_custom_call.1} parent=11 // pred_region
          _
        $region16: #{tpu_custom_call.1} parent=11 // pred_fallthru
          _
        // Predicated region
        $region17: #{tpu_custom_call.1} parent=11 // pred_check
          %p170 = pneg %p84
        $region18: #{tpu_custom_call.1} parent=11 // pred_check_branch
          %172 = sbr.rel (%p170) target = $region20
        $region19: #{tpu_custom_call.1} parent=11 // pred_region
          _
        $region20: #{tpu_custom_call.1} parent=11 // pred_fallthru
          _
        // Predicated region
        $region21: #{tpu_custom_call.1} parent=11 // pred_check
          %p173 = pneg %p105
        $region22: #{tpu_custom_call.1} parent=11 // pred_check_branch
          %175 = sbr.rel (%p173) target = $region24
        $region23: #{tpu_custom_call.1} parent=11 // pred_region
          _
        $region24: #{tpu_custom_call.1} parent=11 // pred_fallthru
          _
        // Predicated region
        $region25: #{tpu_custom_call.1} parent=11 // pred_check
          %p176 = pneg %p126
        $region26: #{tpu_custom_call.1} parent=11 // pred_check_branch
          %178 = sbr.rel (%p176) target = $region28
        $region27: #{tpu_custom_call.1} parent=11 // pred_region
          _
        $region28: #{tpu_custom_call.1} parent=11 // pred_fallthru
          _
      $region12: #{tpu_custom_call.1} parent=5 // pred_fallthru
        _
      %p179 = scmp.lt.s32.totalorder %s16, 2
      // Predicated region
      $region29: #{tpu_custom_call.1} parent=5 // pred_check
        %p180 = pneg %p179
      $region30: #{tpu_custom_call.1} parent=5 // pred_check_branch
        %182 = sbr.rel (%p180) target = $region32
      $region31: #{tpu_custom_call.1} parent=5 // pred_region
        // Predicated region
        $region33: #{tpu_custom_call.1} parent=31 // pred_check
          %p183 = pneg %p36
        $region34: #{tpu_custom_call.1} parent=31 // pred_check_branch
          %185 = sbr.rel (%p183) target = $region36
        $region35: #{tpu_custom_call.1} parent=31 // pred_region
          %s186 = smul.u32 32, %s16
          %p187 = scmp.lt.s32.totalorder %s186, 63
          %s188 = scalar_select %p187, %s186, 63
          %s189 = smul.addr %s188, 8
          %s190 = scalar_lea.vmem %s0, %s189
          %s191 = smul.u32 32, %s16
        $region36: #{tpu_custom_call.1} parent=31 // pred_fallthru
          _
      $region32: #{tpu_custom_call.1} parent=5 // pred_fallthru
        _
      %p192 = scmp.le.s32.totalorder 1, %s16
      %p193 = scmp.lt.s32.totalorder %s16, 3
      %p194 = pnand %p192, %p193
      %p195 = pneg %p194
      // Predicated region
      $region37: #{tpu_custom_call.1} parent=5 // pred_check
        _
      $region38: #{tpu_custom_call.1} parent=5 // pred_check_branch
        %197 = sbr.rel (%p194) target = $region40
      $region39: #{tpu_custom_call.1} parent=5 // pred_region
        %s198 = ssub.s32 %s16, 1
        %s199 = smul.u32 32, %s21
        %p200 = scmp.lt.s32.totalorder %s199, 63
        %s201 = scalar_select %p200, %s199, 63
        %s202 = smul.addr %s201, 8
        %s203 = scalar_lea.vmem %s0, %s202
        %p204 = pneg %p42
        %p205 = pneg %p39
        %p206 = pneg %p63
        %p207 = pneg %p60
        %p208 = pneg %p84
        %p209 = pneg %p81
        %p210 = pneg %p105
        %p211 = pneg %p102
        %p212 = pneg %p126
        %p213 = pneg %p123
        %p214 = pneg %p152
        %p215 = pneg %p149
        %s216 = sand.u32 %s139, 1
        %s217 = scalar_lea.sflag [#allocation4], %s216
        %s218 = sand.u32 %s139, 1
        %s219 = smul.addr %s218, 2
        %s220 = scalar_lea.vmem [#allocation3], %s219
        %s221 = smul.u32 32, %s21
        %p222 = scmp.lt.s32.totalorder %s221, 63
        %s223 = scalar_select %p222, %s221, 63
        %s224 = smul.addr %s223, 8
        %s225 = scalar_lea.vmem %s0, %s224
        %s226 = smul.u32 32, %s21
        %s227 = smul.u32 2, %s21
        %v228 = vld [vmem:[%s225] sm:$0xff]
        %v229 = vld [vmem:[%s225 + $0x8] sm:$0xff]
        %v230 = vld [vmem:[%s225 + $0x10] sm:$0xff]
        %v231 = vld [vmem:[%s225 + $0x18] sm:$0xff]
        %v232 = vld [vmem:[%s225 + $0x20] sm:$0xff]
        %v233 = vld [vmem:[%s225 + $0x28] sm:$0xff]
        %v234 = vld [vmem:[%s225 + $0x30] sm:$0xff]
        %v235 = vld [vmem:[%s225 + $0x38] sm:$0xff]
        %v236 = vld [vmem:[%s225 + $0x40] sm:$0xff]
        %v237 = vld [vmem:[%s225 + $0x48] sm:$0xff]
        %v238 = vld [vmem:[%s225 + $0x50] sm:$0xff]
        %v239 = vld [vmem:[%s225 + $0x58] sm:$0xff]
        %v240 = vld [vmem:[%s225 + $0x60] sm:$0xff]
        %v241 = vld [vmem:[%s225 + $0x68] sm:$0xff]
        %v242 = vld [vmem:[%s225 + $0x70] sm:$0xff]
        %v243 = vld [vmem:[%s225 + $0x78] sm:$0xff]
        %v244 = vld [vmem:[%s225 + $0x80] sm:$0xff]
        %v245 = vld [vmem:[%s225 + $0x88] sm:$0xff]
        %v246 = vld [vmem:[%s225 + $0x90] sm:$0xff]
        %v247 = vld [vmem:[%s225 + $0x98] sm:$0xff]
        %v248 = vld [vmem:[%s225 + $0xa0] sm:$0xff]
        %v249 = vld [vmem:[%s225 + $0xa8] sm:$0xff]
        %v250 = vld [vmem:[%s225 + $0xb0] sm:$0xff]
        %v251 = vld [vmem:[%s225 + $0xb8] sm:$0xff]
        %v252 = vld [vmem:[%s225 + $0xc0] sm:$0xff]
        %v253 = vld [vmem:[%s225 + $0xc8] sm:$0xff]
        %v254 = vld [vmem:[%s225 + $0xd0] sm:$0xff]
        %v255 = vld [vmem:[%s225 + $0xd8] sm:$0xff]
        %v256 = vld [vmem:[%s225 + $0xe0] sm:$0xff]
        %v257 = vld [vmem:[%s225 + $0xe8] sm:$0xff]
        %v258 = vld [vmem:[%s225 + $0xf0] sm:$0xff]
        %v259 = vld [vmem:[%s225 + $0xf8] sm:$0xff]
        %v260 = vld [vmem:[%s1] sm:$0xff]
        %v261 = vld [vmem:[%s1 + $0x8] sm:$0xff]
        %v262 = vld [vmem:[%s2] sm:$0x1]
        %v264 = vlaneseq
        %v265 = vshrl.u32 %v264, 7
        %v266 = vsub.s32 0, %v265
        %v267 = vrot.slane %v262, %v266
        %vm269 = vcmask 130048
        %v271 = vsel %vm269, %v228, 0
        %v274 = vsel %vm269, %v229, 0
        %v277 = vsel %vm269, %v230, 0
        %v280 = vsel %vm269, %v231, 0
        %v283 = vsel %vm269, %v232, 0
        %v286 = vsel %vm269, %v233, 0
        %v289 = vsel %vm269, %v234, 0
        %v292 = vsel %vm269, %v235, 0
        %v295 = vsel %vm269, %v236, 0
        %v298 = vsel %vm269, %v237, 0
        %v301 = vsel %vm269, %v238, 0
        %v304 = vsel %vm269, %v239, 0
        %v307 = vsel %vm269, %v240, 0
        %v310 = vsel %vm269, %v241, 0
        %v313 = vsel %vm269, %v242, 0
        %v316 = vsel %vm269, %v243, 0
        %v319 = vsel %vm269, %v244, 0
        %v322 = vsel %vm269, %v245, 0
        %v325 = vsel %vm269, %v246, 0
        %v328 = vsel %vm269, %v247, 0
        %v331 = vsel %vm269, %v248, 0
        %v334 = vsel %vm269, %v249, 0
        %v337 = vsel %vm269, %v250, 0
        %v340 = vsel %vm269, %v251, 0
        %v343 = vsel %vm269, %v252, 0
        %v346 = vsel %vm269, %v253, 0
        %v349 = vsel %vm269, %v254, 0
        %v352 = vsel %vm269, %v255, 0
        %v355 = vsel %vm269, %v256, 0
        %v358 = vsel %vm269, %v257, 0
        %v361 = vsel %vm269, %v258, 0
        %v364 = vsel %vm269, %v259, 0
        %366 = vmatprep.subr.mxu0 0.0
        %367 = vmatpush1.msra.mxu0 %v260
        %368 = vmatprep.subr.mxu0 0.0
        %369 = vmatpush1.msra.mxu0 %v261
        %370 = vmatprep.subr.mxu0 0.0
        %371 = vmatpush1.msra.mxu0 0.0
        %372 = vmatprep.subr.mxu0 0.0
        %373 = vmatpush1.msra.mxu0 0.0
        %374 = vmatprep.subr.mxu0 0.0
        %375 = vmatpush1.msra.mxu0 0.0
        %376 = vmatprep.subr.mxu0 0.0
        %377 = vmatpush1.msra.mxu0 0.0
        %378 = vmatprep.subr.mxu0 0.0
        %379 = vmatpush1.msra.mxu0 0.0
        %380 = vmatprep.subr.mxu0 0.0
        %381 = vmatpush1.msra.mxu0 0.0
        %382 = vmatprep.subr.mxu0 0.0
        %383 = vmatpush1.msra.mxu0 0.0
        %384 = vmatprep.subr.mxu0 0.0
        %385 = vmatpush1.msra.mxu0 0.0
        %386 = vmatprep.subr.mxu0 0.0
        %387 = vmatpush1.msra.mxu0 0.0
        %388 = vmatprep.subr.mxu0 0.0
        %389 = vmatpush1.msra.mxu0 0.0
        %390 = vmatprep.subr.mxu0 0.0
        %391 = vmatpush1.msra.mxu0 0.0
        %392 = vmatprep.subr.mxu0 0.0
        %393 = vmatpush1.msra.mxu0 0.0
        %394 = vmatprep.subr.mxu0 0.0
        %395 = vmatpush1.msra.mxu0 0.0
        %396 = vmatprep.subr.mxu0 0.0
        %397 = vmatpush1.msra.mxu0 0.0
        %398 = vmatprep.subr.mxu0 0.0
        %399 = vmatpush1.msra.mxu0 0.0
        %400 = vmatprep.subr.mxu0 0.0
        %401 = vmatpush1.msra.mxu0 0.0
        %402 = vmatprep.subr.mxu0 0.0
        %403 = vmatpush1.msra.mxu0 0.0
        %404 = vmatprep.subr.mxu0 0.0
        %405 = vmatpush1.msra.mxu0 0.0
        %406 = vmatprep.subr.mxu0 0.0
        %407 = vmatpush1.msra.mxu0 0.0
        %408 = vmatprep.subr.mxu0 0.0
        %409 = vmatpush1.msra.mxu0 0.0
        %410 = vmatprep.subr.mxu0 0.0
        %411 = vmatpush1.msra.mxu0 0.0
        %412 = vmatprep.subr.mxu0 0.0
        %413 = vmatpush1.msra.mxu0 0.0
        %414 = vmatprep.subr.mxu0 0.0
        %415 = vmatpush1.msra.mxu0 0.0
        %416 = vmatprep.subr.mxu0 0.0
        %417 = vmatpush1.msra.mxu0 0.0
        %418 = vmatprep.subr.mxu0 0.0
        %419 = vmatpush1.msra.mxu0 0.0
        %420 = vmatprep.subr.mxu0 0.0
        %421 = vmatpush1.msra.mxu0 0.0
        %422 = vmatprep.subr.mxu0 0.0
        %423 = vmatpush1.msra.mxu0 0.0
        %424 = vmatprep.subr.mxu0 0.0
        %425 = vmatpush1.msra.mxu0 0.0
        %426 = vmatprep.subr.mxu0 0.0
        %427 = vmatpush1.msra.mxu0 0.0
        %428 = vmatprep.subr.mxu0 0.0
        %429 = vmatpush1.msra.mxu0 0.0
        %430 = vmatprep.mubr.f32.mxu0 0.0
        %431 = vmatmul.mubr.f32.gmra.mrb[0].mxu0 %v271
        %v432 = vpop.f32.mrb[0].mxu0
        %v433 = vadd.f32 %v267, %v432
        %v434 = vpop.f32.mrb[0].mxu0
        %435 = vmatprep.mubr.f32.mxu0 0.0
        %436 = vmatmul.mubr.f32.gmra.mrb[0].mxu0 %v274
        %v437 = vpop.f32.mrb[0].mxu0
        %v438 = vadd.f32 %v267, %v437
        %v439 = vpop.f32.mrb[0].mxu0
        %440 = vmatprep.mubr.f32.mxu0 0.0
        %441 = vmatmul.mubr.f32.gmra.mrb[0].mxu0 %v277
        %v442 = vpop.f32.mrb[0].mxu0
        %v443 = vadd.f32 %v267, %v442
        %v444 = vpop.f32.mrb[0].mxu0
        %445 = vmatprep.mubr.f32.mxu0 0.0
        %446 = vmatmul.mubr.f32.gmra.mrb[0].mxu0 %v280
        %v447 = vpop.f32.mrb[0].mxu0
        %v448 = vadd.f32 %v267, %v447
        %v449 = vpop.f32.mrb[0].mxu0
        %450 = vmatprep.mubr.f32.mxu0 0.0
        %451 = vmatmul.mubr.f32.gmra.mrb[0].mxu0 %v283
        %v452 = vpop.f32.mrb[0].mxu0
        %v453 = vadd.f32 %v267, %v452
        %v454 = vpop.f32.mrb[0].mxu0
        %455 = vmatprep.mubr.f32.mxu0 0.0
        %456 = vmatmul.mubr.f32.gmra.mrb[0].mxu0 %v286
        %v457 = vpop.f32.mrb[0].mxu0
        %v458 = vadd.f32 %v267, %v457
        %v459 = vpop.f32.mrb[0].mxu0
        %460 = vmatprep.mubr.f32.mxu0 0.0
        %461 = vmatmul.mubr.f32.gmra.mrb[0].mxu0 %v289
        %v462 = vpop.f32.mrb[0].mxu0
        %v463 = vadd.f32 %v267, %v462
        %v464 = vpop.f32.mrb[0].mxu0
        %465 = vmatprep.mubr.f32.mxu0 0.0
        %466 = vmatmul.mubr.f32.gmra.mrb[0].mxu0 %v292
        %v467 = vpop.f32.mrb[0].mxu0
        %v468 = vadd.f32 %v267, %v467
        %v469 = vpop.f32.mrb[0].mxu0
        %470 = vmatprep.mubr.f32.mxu0 0.0
        %471 = vmatmul.mubr.f32.gmra.mrb[0].mxu0 %v295
        %v472 = vpop.f32.mrb[0].mxu0
        %v473 = vadd.f32 %v267, %v472
        %v474 = vpop.f32.mrb[0].mxu0
        %475 = vmatprep.mubr.f32.mxu0 0.0
        %476 = vmatmul.mubr.f32.gmra.mrb[0].mxu0 %v298
        %v477 = vpop.f32.mrb[0].mxu0
        %v478 = vadd.f32 %v267, %v477
        %v479 = vpop.f32.mrb[0].mxu0
        %480 = vmatprep.mubr.f32.mxu0 0.0
        %481 = vmatmul.mubr.f32.gmra.mrb[0].mxu0 %v301
        %v482 = vpop.f32.mrb[0].mxu0
        %v483 = vadd.f32 %v267, %v482
        %v484 = vpop.f32.mrb[0].mxu0
        %485 = vmatprep.mubr.f32.mxu0 0.0
        %486 = vmatmul.mubr.f32.gmra.mrb[0].mxu0 %v304
        %v487 = vpop.f32.mrb[0].mxu0
        %v488 = vadd.f32 %v267, %v487
        %v489 = vpop.f32.mrb[0].mxu0
        %490 = vmatprep.mubr.f32.mxu0 0.0
        %491 = vmatmul.mubr.f32.gmra.mrb[0].mxu0 %v307
        %v492 = vpop.f32.mrb[0].mxu0
        %v493 = vadd.f32 %v267, %v492
        %v494 = vpop.f32.mrb[0].mxu0
        %495 = vmatprep.mubr.f32.mxu0 0.0
        %496 = vmatmul.mubr.f32.gmra.mrb[0].mxu0 %v310
        %v497 = vpop.f32.mrb[0].mxu0
        %v498 = vadd.f32 %v267, %v497
        %v499 = vpop.f32.mrb[0].mxu0
        %500 = vmatprep.mubr.f32.mxu0 0.0
        %501 = vmatmul.mubr.f32.gmra.mrb[0].mxu0 %v313
        %v502 = vpop.f32.mrb[0].mxu0
        %v503 = vadd.f32 %v267, %v502
        %v504 = vpop.f32.mrb[0].mxu0
        %505 = vmatprep.mubr.f32.mxu0 0.0
        %506 = vmatmul.mubr.f32.gmra.mrb[0].mxu0 %v316
        %v507 = vpop.f32.mrb[0].mxu0
        %v508 = vadd.f32 %v267, %v507
        %v509 = vpop.f32.mrb[0].mxu0
        %510 = vmatprep.mubr.f32.mxu0 0.0
        %511 = vmatmul.mubr.f32.gmra.mrb[0].mxu0 %v319
        %v512 = vpop.f32.mrb[0].mxu0
        %v513 = vadd.f32 %v267, %v512
        %v514 = vpop.f32.mrb[0].mxu0
        %515 = vmatprep.mubr.f32.mxu0 0.0
        %516 = vmatmul.mubr.f32.gmra.mrb[0].mxu0 %v322
        %v517 = vpop.f32.mrb[0].mxu0
        %v518 = vadd.f32 %v267, %v517
        %v519 = vpop.f32.mrb[0].mxu0
        %520 = vmatprep.mubr.f32.mxu0 0.0
        %521 = vmatmul.mubr.f32.gmra.mrb[0].mxu0 %v325
        %v522 = vpop.f32.mrb[0].mxu0
        %v523 = vadd.f32 %v267, %v522
        %v524 = vpop.f32.mrb[0].mxu0
        %525 = vmatprep.mubr.f32.mxu0 0.0
        %526 = vmatmul.mubr.f32.gmra.mrb[0].mxu0 %v328
        %v527 = vpop.f32.mrb[0].mxu0
        %v528 = vadd.f32 %v267, %v527
        %v529 = vpop.f32.mrb[0].mxu0
        %530 = vmatprep.mubr.f32.mxu0 0.0
        %531 = vmatmul.mubr.f32.gmra.mrb[0].mxu0 %v331
        %v532 = vpop.f32.mrb[0].mxu0
        %v533 = vadd.f32 %v267, %v532
        %v534 = vpop.f32.mrb[0].mxu0
        %535 = vmatprep.mubr.f32.mxu0 0.0
        %536 = vmatmul.mubr.f32.gmra.mrb[0].mxu0 %v334
        %v537 = vpop.f32.mrb[0].mxu0
        %v538 = vadd.f32 %v267, %v537
        %v539 = vpop.f32.mrb[0].mxu0
        %540 = vmatprep.mubr.f32.mxu0 0.0
        %541 = vmatmul.mubr.f32.gmra.mrb[0].mxu0 %v337
        %v542 = vpop.f32.mrb[0].mxu0
        %v543 = vadd.f32 %v267, %v542
        %v544 = vpop.f32.mrb[0].mxu0
        %545 = vmatprep.mubr.f32.mxu0 0.0
        %546 = vmatmul.mubr.f32.gmra.mrb[0].mxu0 %v340
        %v547 = vpop.f32.mrb[0].mxu0
        %v548 = vadd.f32 %v267, %v547
        %v549 = vpop.f32.mrb[0].mxu0
        %550 = vmatprep.mubr.f32.mxu0 0.0
        %551 = vmatmul.mubr.f32.gmra.mrb[0].mxu0 %v343
        %v552 = vpop.f32.mrb[0].mxu0
        %v553 = vadd.f32 %v267, %v552
        %v554 = vpop.f32.mrb[0].mxu0
        %555 = vmatprep.mubr.f32.mxu0 0.0
        %556 = vmatmul.mubr.f32.gmra.mrb[0].mxu0 %v346
        %v557 = vpop.f32.mrb[0].mxu0
        %v558 = vadd.f32 %v267, %v557
        %v559 = vpop.f32.mrb[0].mxu0
        %560 = vmatprep.mubr.f32.mxu0 0.0
        %561 = vmatmul.mubr.f32.gmra.mrb[0].mxu0 %v349
        %v562 = vpop.f32.mrb[0].mxu0
        %v563 = vadd.f32 %v267, %v562
        %v564 = vpop.f32.mrb[0].mxu0
        %565 = vmatprep.mubr.f32.mxu0 0.0
        %566 = vmatmul.mubr.f32.gmra.mrb[0].mxu0 %v352
        %v567 = vpop.f32.mrb[0].mxu0
        %v568 = vadd.f32 %v267, %v567
        %v569 = vpop.f32.mrb[0].mxu0
        %570 = vmatprep.mubr.f32.mxu0 0.0
        %571 = vmatmul.mubr.f32.gmra.mrb[0].mxu0 %v355
        %v572 = vpop.f32.mrb[0].mxu0
        %v573 = vadd.f32 %v267, %v572
        %v574 = vpop.f32.mrb[0].mxu0
        %575 = vmatprep.mubr.f32.mxu0 0.0
        %576 = vmatmul.mubr.f32.gmra.mrb[0].mxu0 %v358
        %v577 = vpop.f32.mrb[0].mxu0
        %v578 = vadd.f32 %v267, %v577
        %v579 = vpop.f32.mrb[0].mxu0
        %580 = vmatprep.mubr.f32.mxu0 0.0
        %581 = vmatmul.mubr.f32.gmra.mrb[0].mxu0 %v361
        %v582 = vpop.f32.mrb[0].mxu0
        %v583 = vadd.f32 %v267, %v582
        %v584 = vpop.f32.mrb[0].mxu0
        %585 = vmatprep.mubr.f32.mxu0 0.0
        %586 = vmatmul.mubr.f32.gmra.mrb[0].mxu0 %v364
        %v587 = vpop.f32.mrb[0].mxu0
        %v588 = vadd.f32 %v267, %v587
        %v589 = vpop.f32.mrb[0].mxu0
        %590 = vdwg.mxu0
        %v591 = vmax.f32 %v433, 0.0
        %v592 = vmax.f32 %v438, 0.0
        %v593 = vmax.f32 %v443, 0.0
        %v594 = vmax.f32 %v448, 0.0
        %v595 = vmax.f32 %v453, 0.0
        %v596 = vmax.f32 %v458, 0.0
        %v597 = vmax.f32 %v463, 0.0
        %v598 = vmax.f32 %v468, 0.0
        %v599 = vmax.f32 %v473, 0.0
        %v600 = vmax.f32 %v478, 0.0
        %v601 = vmax.f32 %v483, 0.0
        %v602 = vmax.f32 %v488, 0.0
        %v603 = vmax.f32 %v493, 0.0
        %v604 = vmax.f32 %v498, 0.0
        %v605 = vmax.f32 %v503, 0.0
        %v606 = vmax.f32 %v508, 0.0
        %v607 = vmax.f32 %v513, 0.0
        %v608 = vmax.f32 %v518, 0.0
        %v609 = vmax.f32 %v523, 0.0
        %v610 = vmax.f32 %v528, 0.0
        %v611 = vmax.f32 %v533, 0.0
        %v612 = vmax.f32 %v538, 0.0
        %v613 = vmax.f32 %v543, 0.0
        %v614 = vmax.f32 %v548, 0.0
        %v615 = vmax.f32 %v553, 0.0
        %v616 = vmax.f32 %v558, 0.0
        %v617 = vmax.f32 %v563, 0.0
        %v618 = vmax.f32 %v568, 0.0
        %v619 = vmax.f32 %v573, 0.0
        %v620 = vmax.f32 %v578, 0.0
        %v621 = vmax.f32 %v583, 0.0
        %v622 = vmax.f32 %v588, 0.0
        %v623 = vld [vmem:[%s3] sm:$0x1]
        %v624 = vld [vmem:[#allocation2] sm:$0x1]
        %626 = vset.pattern.permute.xlu0 0
        %627 = vperm.xlu0 %626, %v624
        %v628 = vpop.permute.xlu0 %627
        %v630 = vlaneseq
        %v631 = vshrl.u32 %v630, 7
        %v632 = vsub.s32 0, %v631
        %v633 = vrot.slane %v628, %v632
        %634 = vmatprep.subr.mxu0 0.0
        %635 = vmatpush1.xpose.msra.mxu0 %v591
        %636 = vmatprep.subr.mxu0 0.0
        %637 = vmatpush1.xpose.msra.mxu0 %v592
        %638 = vmatprep.subr.mxu0 0.0
        %639 = vmatpush1.xpose.msra.mxu0 %v593
        %640 = vmatprep.subr.mxu0 0.0
        %641 = vmatpush1.xpose.msra.mxu0 %v594
        %642 = vmatprep.subr.mxu0 0.0
        %643 = vmatpush1.xpose.msra.mxu0 %v595
        %644 = vmatprep.subr.mxu0 0.0
        %645 = vmatpush1.xpose.msra.mxu0 %v596
        %646 = vmatprep.subr.mxu0 0.0
        %647 = vmatpush1.xpose.msra.mxu0 %v597
        %648 = vmatprep.subr.mxu0 0.0
        %649 = vmatpush1.xpose.msra.mxu0 %v598
        %650 = vmatprep.subr.mxu0 0.0
        %651 = vmatpush1.xpose.msra.mxu0 %v599
        %652 = vmatprep.subr.mxu0 0.0
        %653 = vmatpush1.xpose.msra.mxu0 %v600
        %654 = vmatprep.subr.mxu0 0.0
        %655 = vmatpush1.xpose.msra.mxu0 %v601
        %656 = vmatprep.subr.mxu0 0.0
        %657 = vmatpush1.xpose.msra.mxu0 %v602
        %658 = vmatprep.subr.mxu0 0.0
        %659 = vmatpush1.xpose.msra.mxu0 %v603
        %660 = vmatprep.subr.mxu0 0.0
        %661 = vmatpush1.xpose.msra.mxu0 %v604
        %662 = vmatprep.subr.mxu0 0.0
        %663 = vmatpush1.xpose.msra.mxu0 %v605
        %664 = vmatprep.subr.mxu0 0.0
        %665 = vmatpush1.xpose.msra.mxu0 %v606
        %666 = vmatprep.subr.mxu0 0.0
        %667 = vmatpush1.xpose.msra.mxu0 %v607
        %668 = vmatprep.subr.mxu0 0.0
        %669 = vmatpush1.xpose.msra.mxu0 %v608
        %670 = vmatprep.subr.mxu0 0.0
        %671 = vmatpush1.xpose.msra.mxu0 %v609
        %672 = vmatprep.subr.mxu0 0.0
        %673 = vmatpush1.xpose.msra.mxu0 %v610
        %674 = vmatprep.subr.mxu0 0.0
        %675 = vmatpush1.xpose.msra.mxu0 %v611
        %676 = vmatprep.subr.mxu0 0.0
        %677 = vmatpush1.xpose.msra.mxu0 %v612
        %678 = vmatprep.subr.mxu0 0.0
        %679 = vmatpush1.xpose.msra.mxu0 %v613
        %680 = vmatprep.subr.mxu0 0.0
        %681 = vmatpush1.xpose.msra.mxu0 %v614
        %682 = vmatprep.subr.mxu0 0.0
        %683 = vmatpush1.xpose.msra.mxu0 %v615
        %684 = vmatprep.subr.mxu0 0.0
        %685 = vmatpush1.xpose.msra.mxu0 %v616
        %686 = vmatprep.subr.mxu0 0.0
        %687 = vmatpush1.xpose.msra.mxu0 %v617
        %688 = vmatprep.subr.mxu0 0.0
        %689 = vmatpush1.xpose.msra.mxu0 %v618
        %690 = vmatprep.subr.mxu0 0.0
        %691 = vmatpush1.xpose.msra.mxu0 %v619
        %692 = vmatprep.subr.mxu0 0.0
        %693 = vmatpush1.xpose.msra.mxu0 %v620
        %694 = vmatprep.subr.mxu0 0.0
        %695 = vmatpush1.xpose.msra.mxu0 %v621
        %696 = vmatprep.subr.mxu0 0.0
        %697 = vmatpush1.xpose.msra.mxu0 %v622
        %698 = vmatprep.mubr.f32.mxu0 0.0
        %699 = vmatmul.mubr.f32.gmra.mrb[0].mxu0 %v623
        %v700 = vpop.f32.mrb[0].mxu0
        %v701 = vadd.f32 %v633, %v700
        %v702 = vpop.f32.mrb[0].mxu0
        %v703 = vadd.f32 %v633, %v702
        %704 = vdwg.mxu0
        %v707 = vcombine.low %v701, %v703
        %v709 = vunpack.c.l.s4 1966171168
        %v710 = vunpack.c.0.s8 %v709
        %v711 = vlaneseq
        %v712 = vshrl.u32 %v711, 7
        %v713 = vsub.s32 %v710, %v712
        %v714 = vrot.slane %v707, %v713
        %v716 = vunpack.c.l.s4 1966171168
        %v717 = vunpack.c.0.s8 %v716
        %v718 = vlaneseq
        %v719 = vshrl.u32 %v718, 7
        %v720 = vsub.s32 %v717, %v719
        %v721 = vrot.slane %v714, %v720
        %v723 = vlaneseq
        %vm724 = vcmp.ge.s32.totalorder %v723, 0
        %vm725 = vcmp.lt.s32.totalorder %v723, 256
        %vm726 = vmand %vm724, %vm725
        %727 = vst.msk [vmem:[%s220] sm:$0x3] %vm726, %v721
        %s728 = sand.u32 %s139, 1
        %s729 = scalar_lea.sflag [#allocation4], %s728
        %s730 = sand.u32 %s139, 1
        %s731 = smul.addr %s730, 2
        %s732 = scalar_lea.vmem [#allocation3], %s731
        // Predicated region
        $region41: #{tpu_custom_call.1} parent=39 // pred_check
          %p733 = pneg %p149
        $region42: #{tpu_custom_call.1} parent=39 // pred_check_branch
          %735 = sbr.rel (%p733) target = $region44
        $region43: #{tpu_custom_call.1} parent=39 // pred_region
          %s736 = smul.u32 2, %s21
          %s738 = ssub.s32 32, 32
          %739 = vsyncadd %s729, %s738
          %s740 = smul.addr %s736, 16
          %s741 = scalar_lea.hbm %s5, %s740
          %s743 = sshll.u32 %s732, 4
          %s744 = int_to_ptr.vmem [resolvable:$true] %s743
          %746 = dma.vmem_to_hbm [thread:$0]  %s744, 32, %s741, %s729
        $region44: #{tpu_custom_call.1} parent=39 // pred_fallthru
          _
      $region40: #{tpu_custom_call.1} parent=5 // pred_fallthru
        _
      %p747 = scmp.le.s32.totalorder 2, %s16
      // Predicated region
      $region45: #{tpu_custom_call.1} parent=5 // pred_check
        %p748 = pneg %p747
      $region46: #{tpu_custom_call.1} parent=5 // pred_check_branch
        %750 = sbr.rel (%p748) target = $region48
      $region47: #{tpu_custom_call.1} parent=5 // pred_region
        %s751 = ssub.s32 %s16, 2
        // Predicated region
        $region49: #{tpu_custom_call.1} parent=47 // pred_check
          %p752 = pneg %p155
        $region50: #{tpu_custom_call.1} parent=47 // pred_check_branch
          %754 = sbr.rel (%p752) target = $region52
        $region51: #{tpu_custom_call.1} parent=47 // pred_region
          %s755 = sand.u32 %s140, 1
          %s756 = scalar_lea.sflag [#allocation4], %s755
          %s757 = sand.u32 %s140, 1
          %s758 = smul.addr %s757, 2
          %s759 = scalar_lea.vmem [#allocation3], %s758
          %760 = dma.done %s756, 32
        $region52: #{tpu_custom_call.1} parent=47 // pred_fallthru
          _
      $region48: #{tpu_custom_call.1} parent=5 // pred_fallthru
        _
    $region6: #{tpu_custom_call.1} parent=1 // loop_footer
      %s20 = sadd.s32 1, %s16
    $region7: #{tpu_custom_call.1} parent=1 // loop_footer_branch
      %15 = sbr.rel target = $region3
    $region8: #{tpu_custom_call.1} parent=1 // loop_exit
      _
    %761 = vsyncpa [#allocation4], 1
    %s762 = scalar_lea.sflag [#allocation4], 1
    %763 = vsyncpa %s762, 1

</llo_original>
